<compile_context>
chip_gen: v6e
topology: v6e:2x2x1
jax: 0.10.0
libtpu: 0.0.40
codegen_flags: <defaults>
</compile_context>

<pallas_src>
import functools

import jax
import jax.numpy as jnp
import numpy as np
from jax.experimental import pallas as pl
from jax.experimental.pallas import tpu as pltpu


def _temporal_loss_kernel(*refs, num_frames, norm, eps):
    """refs = (frame_0, ..., frame_{F-1}, out).

    frame_f block: (1, C, TILE)  -- native dtype
    out     block: (1, 1, TILE)  -- f32 partial sums (over frames-pairs and channels)
    """
    frame_refs = refs[:num_frames]
    out_ref = refs[num_frames]

    def load_and_normalize(ref):
        x = ref[...].astype(jnp.float32)                       # (1, C, T)
        if norm:
            ss = jnp.sum(x * x, axis=1, keepdims=True)         # (1, 1, T)
            # 1 / max(||x||, eps): exactly F.normalize; one EUP op per spatial
            # column, then a cheap VPU broadcast-multiply over C.
            inv = 1.0 / jnp.maximum(jnp.sqrt(ss), eps)
            x = x * inv
        return x

    # Stream frames pairwise: only `prev` and `acc` stay live (bounded vreg pressure).
    prev = load_and_normalize(frame_refs[0])
    acc = jnp.zeros(out_ref.shape, jnp.float32)                # (1, 1, T)
    for f in range(1, num_frames):                             # static, small F -> unrolled
        cur = load_and_normalize(frame_refs[f])
        acc = acc + jnp.sum(jnp.abs(cur - prev), axis=1, keepdims=True)
        prev = cur

    out_ref[...] = acc                                         # lane-dense unmasked store


def _pick_hw_tile(hw, per_col_bytes, budget_bytes=8 * 1024 * 1024, max_tile=4096):
    """Largest divisor of hw that is a multiple of 128 and fits the VMEM budget."""
    if hw % 128 != 0:
        return hw  # small/odd maps: block equals the full array extent
    limit = min(hw, max_tile, max(128, budget_bytes // max(per_col_bytes, 1)))
    tile = 128
    t = 128
    while t <= limit:
        if hw % t == 0:
            tile = t
        t += 128
    return tile


def temporal_loss_pallas(feats_list, scores_list, masks_list, *,
                         block_size, loss_weight=1.0, norm=True):
    """feats_list: list (len F) of (N, C, H, W) arrays.  scores/masks mirror the module
    interface; with regular=True grid proposals and forward-value semantics they do not
    change the returned loss value."""
    del scores_list, masks_list  # value-level no-ops for this configuration
    # TODO(synk): regular=False path (torch.multinomial boundary sampling) is stochastic
    # and not implemented; gradients of the directional-detach mixing are not reproduced.

    F_ = len(feats_list)
    N, C, H, W = feats_list[0].shape
    b = block_size
    assert H % b == 0 and W % b == 0, \
        "regular grid proposals require H, W divisible by block_size"
    HW = H * W

    # Free contiguous reshape per frame (no stack, no dtype staging copy in HBM).
    frames = [jnp.reshape(f, (N, C, HW)) for f in feats_list]
    in_dtype = frames[0].dtype
    elem_bytes = jnp.dtype(in_dtype).itemsize

    # VMEM footprint per spatial column: F double-buffered input blocks (+ output).
    # C pads to >=8 sublanes (f32) / >=16 (sub-32-bit) inside VMEM.
    padded_c = max(C, 8 if elem_bytes >= 4 else 16)
    per_col_bytes = 2 * F_ * padded_c * elem_bytes + 2 * 4
    hw_tile = _pick_hw_tile(HW, per_col_bytes)
    n_tiles = HW // hw_tile

    in_specs = [
        pl.BlockSpec((1, C, hw_tile), lambda i, j: (i, 0, j))
        for _ in range(F_)
    ]
    out_specs = pl.BlockSpec((1, 1, hw_tile),
                             lambda i, j: (i * n_tiles + j, 0, 0))

    partial_sums = pl.pallas_call(
        functools.partial(_temporal_loss_kernel,
                          num_frames=F_, norm=norm, eps=1e-12),
        out_shape=jax.ShapeDtypeStruct((N * n_tiles, 1, hw_tile), jnp.float32),
        grid=(N, n_tiles),
        in_specs=in_specs,
        out_specs=out_specs,
        compiler_params=pltpu.CompilerParams(
            dimension_semantics=("parallel", "parallel"),
            vmem_limit_bytes=32 * 1024 * 1024),
    )(*frames)

    # Tiny final reduction (N*H*W f32) done in plain JAX.
    total = jnp.sum(partial_sums, dtype=jnp.float32)

    nblocks = (H // b) * (W // b)
    count = N * nblocks
    # sum_{i,p} (1/(F-1)) * mean_block|d|  ==  total / ((F-1) * C*b*b); then /count, *weight
    scale = loss_weight / ((F_ - 1) * C * b * b * count)
    return total * scale


def reference_loss(feats_list, *, block_size, loss_weight=1.0, norm=True):
    """Pure-JAX literal re-implementation of the PyTorch per-block loop (regular=True)."""
    F_ = len(feats_list)
    n, c, h, w = feats_list[0].shape
    feats = [f.astype(jnp.float32) for f in feats_list]
    if norm:
        feats = [f / jnp.maximum(jnp.sqrt(jnp.sum(f * f, axis=1, keepdims=True)), 1e-12)
                 for f in feats]
    b = block_size
    loss = 0.0
    count = 0
    for i in range(n):
        for bi in range(h // b):
            for bj in range(w // b):
                ph, pw = bi * b, bj * b
                blocks = [f[i, :, ph:ph + b, pw:pw + b] for f in feats]
                ls = 0.0
                for nf in range(F_ - 1):
                    ls += jnp.mean(jnp.abs(blocks[nf] - blocks[nf + 1]))
                ls = ls / (F_ - 1)
                loss += ls
                count += 1
    return loss / count * loss_weight


if __name__ == "__main__":
    key = jax.random.PRNGKey(0)
    F_, N, C, H, W = 4, 2, 4, 16, 16
    block_size = 4
    loss_weight = 1.0

    keys = jax.random.split(key, 3 * F_)
    feats = [jax.random.normal(keys[i], (N, C, H, W), dtype=jnp.float32)
             for i in range(F_)]
    scores = [jax.random.normal(keys[F_ + i], (N, 1, H, W), dtype=jnp.float32)
              for i in range(F_)]
    masks = [jax.random.randint(keys[2 * F_ + i], (N, 1, H, W), 0, 4)
             for i in range(F_)]

    loss = temporal_loss_pallas(feats, scores, masks,
                                block_size=block_size,
                                loss_weight=loss_weight, norm=True)
    loss = jax.block_until_ready(loss)

    ref = reference_loss(feats, block_size=block_size,
                         loss_weight=loss_weight, norm=True)
    ref = jax.block_until_ready(ref)

    np.testing.assert_allclose(np.asarray(loss), np.asarray(ref), rtol=1e-5, atol=1e-5)
    print("KERNEL_OK")
</pallas_src>

<mosaic_0001>
module attributes {stable_mosaic.version = 11 : i64} {
  func.func @_temporal_loss_kernel(%arg0: i32, %arg1: i32, %arg2: memref<1x4x256xf32, #tpu.memory_space<vmem>>, %arg3: memref<1x4x256xf32, #tpu.memory_space<vmem>>, %arg4: memref<1x4x256xf32, #tpu.memory_space<vmem>>, %arg5: memref<1x4x256xf32, #tpu.memory_space<vmem>>, %arg6: memref<1x1x256xf32, #tpu.memory_space<vmem>>) attributes {dimension_semantics = [#tpu.dimension_semantics<parallel>, #tpu.dimension_semantics<parallel>], iteration_bounds = array<i64: 2, 1>, scalar_prefetch = 0 : i64, scratch_operands = 0 : i64, tpu.core_type = #tpu.core_type<tc>, window_params = [{transform_indices = @transform_0, window_bounds = array<i64: 1, 4, 256>}, {transform_indices = @transform_1, window_bounds = array<i64: 1, 4, 256>}, {transform_indices = @transform_2, window_bounds = array<i64: 1, 4, 256>}, {transform_indices = @transform_3, window_bounds = array<i64: 1, 4, 256>}, {transform_indices = @transform_4, window_bounds = array<i64: 1, 1, 256>}]} {
    %c0 = arith.constant 0 : index
    %c0_0 = arith.constant 0 : index
    %c0_1 = arith.constant 0 : index
    %0 = vector.load %arg2[%c0, %c0_0, %c0_1] : memref<1x4x256xf32, #tpu.memory_space<vmem>>, vector<1x4x256xf32>
    %1 = arith.mulf %0, %0 : vector<1x4x256xf32>
    %cst = arith.constant dense<0.000000e+00> : vector<1x256xf32>
    %2 = vector.multi_reduction <add>, %1, %cst [1] : vector<1x4x256xf32> to vector<1x256xf32>
    %3 = vector.shape_cast %2 : vector<1x256xf32> to vector<1x1x256xf32>
    %4 = math.sqrt %3 : vector<1x1x256xf32>
    %cst_2 = arith.constant 9.99999996E-13 : f32
    %5 = vector.broadcast %cst_2 : f32 to vector<1x1x256xf32>
    %6 = arith.maximumf %4, %5 : vector<1x1x256xf32>
    %cst_3 = arith.constant 1.000000e+00 : f32
    %7 = vector.broadcast %cst_3 : f32 to vector<1x1x256xf32>
    %8 = arith.divf %7, %6 : vector<1x1x256xf32>
    %9 = vector.broadcast %8 : vector<1x1x256xf32> to vector<1x4x256xf32>
    %10 = arith.mulf %0, %9 : vector<1x4x256xf32>
    %cst_4 = arith.constant 0.000000e+00 : f32
    %11 = vector.broadcast %cst_4 : f32 to vector<1x1x256xf32>
    %c0_5 = arith.constant 0 : index
    %c0_6 = arith.constant 0 : index
    %c0_7 = arith.constant 0 : index
    %12 = vector.load %arg3[%c0_5, %c0_6, %c0_7] : memref<1x4x256xf32, #tpu.memory_space<vmem>>, vector<1x4x256xf32>
    %13 = arith.mulf %12, %12 : vector<1x4x256xf32>
    %cst_8 = arith.constant dense<0.000000e+00> : vector<1x256xf32>
    %14 = vector.multi_reduction <add>, %13, %cst_8 [1] : vector<1x4x256xf32> to vector<1x256xf32>
    %15 = vector.shape_cast %14 : vector<1x256xf32> to vector<1x1x256xf32>
    %16 = math.sqrt %15 : vector<1x1x256xf32>
    %cst_9 = arith.constant 9.99999996E-13 : f32
    %17 = vector.broadcast %cst_9 : f32 to vector<1x1x256xf32>
    %18 = arith.maximumf %16, %17 : vector<1x1x256xf32>
    %cst_10 = arith.constant 1.000000e+00 : f32
    %19 = vector.broadcast %cst_10 : f32 to vector<1x1x256xf32>
    %20 = arith.divf %19, %18 : vector<1x1x256xf32>
    %21 = vector.broadcast %20 : vector<1x1x256xf32> to vector<1x4x256xf32>
    %22 = arith.mulf %12, %21 : vector<1x4x256xf32>
    %23 = arith.subf %22, %10 : vector<1x4x256xf32>
    %24 = math.absf %23 : vector<1x4x256xf32>
    %cst_11 = arith.constant dense<0.000000e+00> : vector<1x256xf32>
    %25 = vector.multi_reduction <add>, %24, %cst_11 [1] : vector<1x4x256xf32> to vector<1x256xf32>
    %26 = vector.shape_cast %25 : vector<1x256xf32> to vector<1x1x256xf32>
    %27 = arith.addf %11, %26 : vector<1x1x256xf32>
    %c0_12 = arith.constant 0 : index
    %c0_13 = arith.constant 0 : index
    %c0_14 = arith.constant 0 : index
    %28 = vector.load %arg4[%c0_12, %c0_13, %c0_14] : memref<1x4x256xf32, #tpu.memory_space<vmem>>, vector<1x4x256xf32>
    %29 = arith.mulf %28, %28 : vector<1x4x256xf32>
    %cst_15 = arith.constant dense<0.000000e+00> : vector<1x256xf32>
    %30 = vector.multi_reduction <add>, %29, %cst_15 [1] : vector<1x4x256xf32> to vector<1x256xf32>
    %31 = vector.shape_cast %30 : vector<1x256xf32> to vector<1x1x256xf32>
    %32 = math.sqrt %31 : vector<1x1x256xf32>
    %cst_16 = arith.constant 9.99999996E-13 : f32
    %33 = vector.broadcast %cst_16 : f32 to vector<1x1x256xf32>
    %34 = arith.maximumf %32, %33 : vector<1x1x256xf32>
    %cst_17 = arith.constant 1.000000e+00 : f32
    %35 = vector.broadcast %cst_17 : f32 to vector<1x1x256xf32>
    %36 = arith.divf %35, %34 : vector<1x1x256xf32>
    %37 = vector.broadcast %36 : vector<1x1x256xf32> to vector<1x4x256xf32>
    %38 = arith.mulf %28, %37 : vector<1x4x256xf32>
    %39 = arith.subf %38, %22 : vector<1x4x256xf32>
    %40 = math.absf %39 : vector<1x4x256xf32>
    %cst_18 = arith.constant dense<0.000000e+00> : vector<1x256xf32>
    %41 = vector.multi_reduction <add>, %40, %cst_18 [1] : vector<1x4x256xf32> to vector<1x256xf32>
    %42 = vector.shape_cast %41 : vector<1x256xf32> to vector<1x1x256xf32>
    %43 = arith.addf %27, %42 : vector<1x1x256xf32>
    %c0_19 = arith.constant 0 : index
    %c0_20 = arith.constant 0 : index
    %c0_21 = arith.constant 0 : index
    %44 = vector.load %arg5[%c0_19, %c0_20, %c0_21] : memref<1x4x256xf32, #tpu.memory_space<vmem>>, vector<1x4x256xf32>
    %45 = arith.mulf %44, %44 : vector<1x4x256xf32>
    %cst_22 = arith.constant dense<0.000000e+00> : vector<1x256xf32>
    %46 = vector.multi_reduction <add>, %45, %cst_22 [1] : vector<1x4x256xf32> to vector<1x256xf32>
    %47 = vector.shape_cast %46 : vector<1x256xf32> to vector<1x1x256xf32>
    %48 = math.sqrt %47 : vector<1x1x256xf32>
    %cst_23 = arith.constant 9.99999996E-13 : f32
    %49 = vector.broadcast %cst_23 : f32 to vector<1x1x256xf32>
    %50 = arith.maximumf %48, %49 : vector<1x1x256xf32>
    %cst_24 = arith.constant 1.000000e+00 : f32
    %51 = vector.broadcast %cst_24 : f32 to vector<1x1x256xf32>
    %52 = arith.divf %51, %50 : vector<1x1x256xf32>
    %53 = vector.broadcast %52 : vector<1x1x256xf32> to vector<1x4x256xf32>
    %54 = arith.mulf %44, %53 : vector<1x4x256xf32>
    %55 = arith.subf %54, %38 : vector<1x4x256xf32>
    %56 = math.absf %55 : vector<1x4x256xf32>
    %cst_25 = arith.constant dense<0.000000e+00> : vector<1x256xf32>
    %57 = vector.multi_reduction <add>, %56, %cst_25 [1] : vector<1x4x256xf32> to vector<1x256xf32>
    %58 = vector.shape_cast %57 : vector<1x256xf32> to vector<1x1x256xf32>
    %59 = arith.addf %43, %58 : vector<1x1x256xf32>
    %c0_26 = arith.constant 0 : index
    %c0_27 = arith.constant 0 : index
    %c0_28 = arith.constant 0 : index
    %60 = vector.load %arg6[%c0_26, %c0_27, %c0_28] : memref<1x1x256xf32, #tpu.memory_space<vmem>>, vector<1x1x256xf32>
    tpu.vector_store %arg6[%c0_26, %c0_27, %c0_28], %59 {strides = array<i32>} : memref<1x1x256xf32, #tpu.memory_space<vmem>>, vector<1x1x256xf32>,
    return
  }
  func.func @transform_0(%arg0: i32, %arg1: i32) -> (i32, i32, i32) {
    %c0_i32 = arith.constant 0 : i32
    %c0_i32_0 = arith.constant 0 : i32
    return %arg0, %c0_i32, %arg1 : i32, i32, i32
  }
  func.func @transform_1(%arg0: i32, %arg1: i32) -> (i32, i32, i32) {
    %c0_i32 = arith.constant 0 : i32
    %c0_i32_0 = arith.constant 0 : i32
    return %arg0, %c0_i32, %arg1 : i32, i32, i32
  }
  func.func @transform_2(%arg0: i32, %arg1: i32) -> (i32, i32, i32) {
    %c0_i32 = arith.constant 0 : i32
    %c0_i32_0 = arith.constant 0 : i32
    return %arg0, %c0_i32, %arg1 : i32, i32, i32
  }
  func.func @transform_3(%arg0: i32, %arg1: i32) -> (i32, i32, i32) {
    %c0_i32 = arith.constant 0 : i32
    %c0_i32_0 = arith.constant 0 : i32
    return %arg0, %c0_i32, %arg1 : i32, i32, i32
  }
  func.func @transform_4(%arg0: i32, %arg1: i32) -> (i32, i32, i32) {
    %c1_i32 = arith.constant 1 : i32
    %0 = arith.muli %arg0, %c1_i32 : i32
    %1 = arith.addi %0, %arg1 : i32
    %c0_i32 = arith.constant 0 : i32
    %c0_i32_0 = arith.constant 0 : i32
    %c0_i32_1 = arith.constant 0 : i32
    return %1, %c0_i32, %c0_i32_0 : i32, i32, i32
  }
}

</mosaic_0001>

<llo_original>
// kernel: tpu_custom_call.1
$region0: #{tpu_custom_call.1}
  #allocation0 [shape = 'u32[]', space=smem, size = 0x4, offset = 0x4, fixed_abs, tag = 'smem constant byte address 0x4 - core index']
  #allocation1 [shape = 'u32[144,128]{1,0:T(1,128)}', space=vmem, size = 0x12000, scoped, tag = 'internal scratch']
  %s0 = inlined_call_operand.hbm [shape: f32[2,4,256], index: 0, kind: input, shape index: {}]
  %s1 = inlined_call_operand.hbm [shape: f32[2,4,256], index: 1, kind: input, shape index: {}]
  %s2 = inlined_call_operand.hbm [shape: f32[2,4,256], index: 2, kind: input, shape index: {}]
  %s3 = inlined_call_operand.hbm [shape: f32[2,4,256], index: 3, kind: input, shape index: {}]
  %s4 = inlined_call_operand.hbm [shape: f32[2,1,256], index: 4, kind: output, shape index: {}]
  %s5 = sld [smem:[#allocation0]]
  $region65: #{tpu_custom_call.1} parent=0
    _
  %s7 = ssub.s32 1, %s5
  %s8 = scalar_select 0, %s7, %s5
  $region1: #{tpu_custom_call.1} parent=0
    #allocation2 [shape = 'u8[8192]{0}', space=vmem, size = 0x2000, scoped, tag = 'input window, operand 0']
    #allocation3 [shape = 's32[2]{0}', space=sflag, size = 0x8, scoped, tag = 'scoped memory for tpu_custom_call.1']
    #allocation4 [shape = 's32[2]{0}', space=sflag, size = 0x8, scoped, tag = 'scoped memory for tpu_custom_call.1']
    #allocation5 [shape = 'u8[8192]{0}', space=vmem, size = 0x2000, scoped, tag = 'input window, operand 1']
    #allocation6 [shape = 's32[2]{0}', space=sflag, size = 0x8, scoped, tag = 'scoped memory for tpu_custom_call.1']
    #allocation7 [shape = 'u8[8192]{0}', space=vmem, size = 0x2000, scoped, tag = 'input window, operand 2']
    #allocation8 [shape = 'u8[8192]{0}', space=vmem, size = 0x2000, scoped, tag = 'input window, operand 3']
    #allocation9 [shape = 's32[2]{0}', space=sflag, size = 0x8, scoped, tag = 'scoped memory for tpu_custom_call.1']
    #allocation10 [shape = 'u8[2048]{0}', space=vmem, size = 0x800, scoped, tag = 'output window, operand 0']
    %9 = vsyncpa [#allocation3], 0
    %s10 = scalar_lea.sflag [#allocation3], 1
    %11 = vsyncpa %s10, 0
    %12 = vsyncpa [#allocation6], 0
    %s13 = scalar_lea.sflag [#allocation6], 1
    %14 = vsyncpa %s13, 0
    %15 = vsyncpa [#allocation9], 0
    %s16 = scalar_lea.sflag [#allocation9], 1
    %17 = vsyncpa %s16, 0
    %18 = vsyncpa [#allocation4], 0
    %s19 = scalar_lea.sflag [#allocation4], 1
    %20 = vsyncpa %s19, 0
    loop: start=0, step=1, limit=4
    $region2: #{tpu_custom_call.1} parent=1 // loop_pre_header
      _
    $region3: #{tpu_custom_call.1} parent=1 // loop_header
      %s22 = sphi 0, %s26
      %p23 = scmp.ge.s32.totalorder %s22, 4
      %s29 = sphi 0, %s41
      %s30 = sphi 0, %s37
      %s31 = sphi 0, %s29
      %s32 = sphi 0, %s30
      %s33 = sphi 0, %s31
      %s34 = sphi 0, %s32
      %s46 = sphi 0, %s48
      %s49 = sphi 0, %s46
      %s50 = sphi 0, %s49
      %s66 = sphi 0, %s50
      %s74 = sphi 0, %s76
      %s77 = sphi 0, %s74
      %s78 = sphi 0, %s77
      %s94 = sphi 0, %s78
      %s102 = sphi 0, %s104
      %s105 = sphi 0, %s102
      %s106 = sphi 0, %s105
      %s122 = sphi 0, %s106
      %s130 = sphi 0, %s132
      %s133 = sphi 0, %s130
      %s134 = sphi 0, %s133
      %s150 = sphi 0, %s134
      %s158 = sphi 0, %s160
      %s161 = sphi 0, %s158
      %s162 = sphi 0, %s161
      %s178 = sphi 0, %s162
    $region4: #{tpu_custom_call.1} parent=1 // loop_header_branch
      %25 = sbr.rel (%p23) target = $region8
    $region5: #{tpu_custom_call.1} parent=1 // loop_body
      %s27 = ssub.s32 %s22, 1
      %s28 = ssub.s32 %s22, 2
      %s35 = sadd.s32 1, %s30
      %p36 = scmp.ge.s32.totalorder %s35, 1
      %s37 = scalar_select %p36, 0, %s35
      %s38 = sadd.s32 1, %s29
      %s39 = scalar_select %p36, %s38, %s29
      %p40 = scmp.ge.s32.totalorder %s39, 2
      %s41 = scalar_select %p40, 0, %s39
      %s42 = ssub.s32 %s29, %s41
      %s43 = ssub.s32 %s30, %s37
      %s44 = sor.u32 %s42, %s43
      %p45 = scmp.eq.s32.totalorder %s44, 0
      %s47 = sadd.s32 %s46, 1
      %s48 = scalar_select %p45, %s46, %s47
      %p51 = pneg %p45
      %p52 = scmp.eq.s32.totalorder %s22, 1
      %p53 = por %p51, %p52
      %p54 = scmp.ne.s32.totalorder %s46, %s49
      %p55 = scmp.eq.s32.totalorder %s22, 0
      %p56 = por %p54, %p55
      %p57 = scmp.ne.s32.totalorder %s46, %s49
      %p58 = scmp.eq.s32.totalorder %s27, 1
      %p59 = por %p57, %p58
      %p60 = scmp.ne.s32.totalorder %s49, %s50
      %p61 = scmp.eq.s32.totalorder %s27, 0
      %p62 = por %p60, %p61
      %p63 = scmp.ne.s32.totalorder %s49, %s50
      %p64 = scmp.eq.s32.totalorder %s28, 1
      %p65 = por %p63, %p64
      %p67 = scmp.ne.s32.totalorder %s50, %s66
      %p68 = scmp.eq.s32.totalorder %s28, 0
      %p69 = por %p67, %p68
      %s70 = ssub.s32 %s29, %s41
      %s71 = ssub.s32 %s30, %s37
      %s72 = sor.u32 %s70, %s71
      %p73 = scmp.eq.s32.totalorder %s72, 0
      %s75 = sadd.s32 %s74, 1
      %s76 = scalar_select %p73, %s74, %s75
      %p79 = pneg %p73
      %p80 = scmp.eq.s32.totalorder %s22, 1
      %p81 = por %p79, %p80
      %p82 = scmp.ne.s32.totalorder %s74, %s77
      %p83 = scmp.eq.s32.totalorder %s22, 0
      %p84 = por %p82, %p83
      %p85 = scmp.ne.s32.totalorder %s74, %s77
      %p86 = scmp.eq.s32.totalorder %s27, 1
      %p87 = por %p85, %p86
      %p88 = scmp.ne.s32.totalorder %s77, %s78
      %p89 = scmp.eq.s32.totalorder %s27, 0
      %p90 = por %p88, %p89
      %p91 = scmp.ne.s32.totalorder %s77, %s78
      %p92 = scmp.eq.s32.totalorder %s28, 1
      %p93 = por %p91, %p92
      %p95 = scmp.ne.s32.totalorder %s78, %s94
      %p96 = scmp.eq.s32.totalorder %s28, 0
      %p97 = por %p95, %p96
      %s98 = ssub.s32 %s29, %s41
      %s99 = ssub.s32 %s30, %s37
      %s100 = sor.u32 %s98, %s99
      %p101 = scmp.eq.s32.totalorder %s100, 0
      %s103 = sadd.s32 %s102, 1
      %s104 = scalar_select %p101, %s102, %s103
      %p107 = pneg %p101
      %p108 = scmp.eq.s32.totalorder %s22, 1
      %p109 = por %p107, %p108
      %p110 = scmp.ne.s32.totalorder %s102, %s105
      %p111 = scmp.eq.s32.totalorder %s22, 0
      %p112 = por %p110, %p111
      %p113 = scmp.ne.s32.totalorder %s102, %s105
      %p114 = scmp.eq.s32.totalorder %s27, 1
      %p115 = por %p113, %p114
      %p116 = scmp.ne.s32.totalorder %s105, %s106
      %p117 = scmp.eq.s32.totalorder %s27, 0
      %p118 = por %p116, %p117
      %p119 = scmp.ne.s32.totalorder %s105, %s106
      %p120 = scmp.eq.s32.totalorder %s28, 1
      %p121 = por %p119, %p120
      %p123 = scmp.ne.s32.totalorder %s106, %s122
      %p124 = scmp.eq.s32.totalorder %s28, 0
      %p125 = por %p123, %p124
      %s126 = ssub.s32 %s29, %s41
      %s127 = ssub.s32 %s30, %s37
      %s128 = sor.u32 %s126, %s127
      %p129 = scmp.eq.s32.totalorder %s128, 0
      %s131 = sadd.s32 %s130, 1
      %s132 = scalar_select %p129, %s130, %s131
      %p135 = pneg %p129
      %p136 = scmp.eq.s32.totalorder %s22, 1
      %p137 = por %p135, %p136
      %p138 = scmp.ne.s32.totalorder %s130, %s133
      %p139 = scmp.eq.s32.totalorder %s22, 0
      %p140 = por %p138, %p139
      %p141 = scmp.ne.s32.totalorder %s130, %s133
      %p142 = scmp.eq.s32.totalorder %s27, 1
      %p143 = por %p141, %p142
      %p144 = scmp.ne.s32.totalorder %s133, %s134
      %p145 = scmp.eq.s32.totalorder %s27, 0
      %p146 = por %p144, %p145
      %p147 = scmp.ne.s32.totalorder %s133, %s134
      %p148 = scmp.eq.s32.totalorder %s28, 1
      %p149 = por %p147, %p148
      %p151 = scmp.ne.s32.totalorder %s134, %s150
      %p152 = scmp.eq.s32.totalorder %s28, 0
      %p153 = por %p151, %p152
      %s154 = sadd.s32 %s29, %s30
      %s155 = sadd.s32 %s41, %s37
      %s156 = ssub.s32 %s154, %s155
      %p157 = scmp.eq.s32.totalorder %s156, 0
      %s159 = sadd.s32 %s158, 1
      %s160 = scalar_select %p157, %s158, %s159
      %p163 = pneg %p157
      %p164 = scmp.eq.s32.totalorder %s22, 1
      %p165 = por %p163, %p164
      %p166 = scmp.ne.s32.totalorder %s158, %s161
      %p167 = scmp.eq.s32.totalorder %s22, 0
      %p168 = por %p166, %p167
      %p169 = scmp.ne.s32.totalorder %s158, %s161
      %p170 = scmp.eq.s32.totalorder %s27, 1
      %p171 = por %p169, %p170
      %p172 = scmp.ne.s32.totalorder %s161, %s162
      %p173 = scmp.eq.s32.totalorder %s27, 0
      %p174 = por %p172, %p173
      %p175 = scmp.ne.s32.totalorder %s161, %s162
      %p176 = scmp.eq.s32.totalorder %s28, 1
      %p177 = por %p175, %p176
      %p179 = scmp.ne.s32.totalorder %s162, %s178
      %p180 = scmp.eq.s32.totalorder %s28, 0
      %p181 = por %p179, %p180
      %p182 = scmp.le.s32.totalorder 1, %s22
      %p183 = scmp.lt.s32.totalorder %s22, 3
      %p184 = pnand %p182, %p183
      %p185 = pneg %p184
      // Predicated region
      $region9: #{tpu_custom_call.1} parent=5 // pred_check
        _
      $region10: #{tpu_custom_call.1} parent=5 // pred_check_branch
        %187 = sbr.rel (%p184) target = $region12
      $region11: #{tpu_custom_call.1} parent=5 // pred_region
        %s188 = ssub.s32 %s22, 1
      $region12: #{tpu_custom_call.1} parent=5 // pred_fallthru
        _
      %p189 = scmp.lt.s32.totalorder %s22, 2
      // Predicated region
      $region13: #{tpu_custom_call.1} parent=5 // pred_check
        %p190 = pneg %p189
      $region14: #{tpu_custom_call.1} parent=5 // pred_check_branch
        %192 = sbr.rel (%p190) target = $region16
      $region15: #{tpu_custom_call.1} parent=5 // pred_region
        // Predicated region
        $region17: #{tpu_custom_call.1} parent=15 // pred_check
          %p193 = pneg %p56
        $region18: #{tpu_custom_call.1} parent=15 // pred_check_branch
          %195 = sbr.rel (%p193) target = $region20
        $region19: #{tpu_custom_call.1} parent=15 // pred_region
          %s196 = sand.u32 %s46, 1
          %s197 = scalar_lea.sflag [#allocation3], %s196
          %s198 = sand.u32 %s46, 1
          %s199 = smul.addr %s198, 8
          %s200 = scalar_lea.vmem [#allocation2], %s199
          %s201 = smul.u32 2, %s30
          %s203 = ssub.s32 128, 128
          %204 = vsyncadd %s197, %s203
          %s205 = smul.addr %s29, 2
          %s206 = sadd.s32 %s201, %s205
          %s207 = smul.addr %s206, 64
          %s208 = scalar_lea.hbm %s0, %s207
          %s210 = sshll.u32 %s200, 4
          %s211 = int_to_ptr.vmem [resolvable:$true] %s210
          %213 = dma.hbm_to_vmem [thread:$0]  %s208, 128, %s211, %s197
        $region20: #{tpu_custom_call.1} parent=15 // pred_fallthru
          _
        // Predicated region
        $region21: #{tpu_custom_call.1} parent=15 // pred_check
          %p214 = pneg %p84
        $region22: #{tpu_custom_call.1} parent=15 // pred_check_branch
          %216 = sbr.rel (%p214) target = $region24
        $region23: #{tpu_custom_call.1} parent=15 // pred_region
          %s217 = sand.u32 %s22, 1
          %s218 = scalar_lea.sflag [#allocation6], %s217
          %s219 = sand.u32 %s74, 1
          %s220 = smul.addr %s219, 8
          %s221 = scalar_lea.vmem [#allocation5], %s220
          %s222 = smul.u32 2, %s30
          %s224 = ssub.s32 128, 128
          %225 = vsyncadd %s218, %s224
          %s226 = smul.addr %s29, 2
          %s227 = sadd.s32 %s222, %s226
          %s228 = smul.addr %s227, 64
          %s229 = scalar_lea.hbm %s1, %s228
          %s231 = sshll.u32 %s221, 4
          %s232 = int_to_ptr.vmem [resolvable:$true] %s231
          %234 = dma.hbm_to_vmem [thread:$0]  %s229, 128, %s232, %s218
        $region24: #{tpu_custom_call.1} parent=15 // pred_fallthru
          _
        // Predicated region
        $region25: #{tpu_custom_call.1} parent=15 // pred_check
          %p235 = pneg %p112
        $region26: #{tpu_custom_call.1} parent=15 // pred_check_branch
          %237 = sbr.rel (%p235) target = $region28
        $region27: #{tpu_custom_call.1} parent=15 // pred_region
          %s238 = sand.u32 %s22, 1
          %s239 = scalar_lea.sflag [#allocation6], %s238
          %s240 = sand.u32 %s102, 1
          %s241 = smul.addr %s240, 8
          %s242 = scalar_lea.vmem [#allocation7], %s241
          %s243 = smul.u32 2, %s30
          %s245 = ssub.s32 128, 128
          %246 = vsyncadd %s239, %s245
          %s247 = smul.addr %s29, 2
          %s248 = sadd.s32 %s243, %s247
          %s249 = smul.addr %s248, 64
          %s250 = scalar_lea.hbm %s2, %s249
          %s252 = sshll.u32 %s242, 4
          %s253 = int_to_ptr.vmem [resolvable:$true] %s252
          %255 = dma.hbm_to_vmem [thread:$0]  %s250, 128, %s253, %s239
        $region28: #{tpu_custom_call.1} parent=15 // pred_fallthru
          _
        // Predicated region
        $region29: #{tpu_custom_call.1} parent=15 // pred_check
          %p256 = pneg %p140
        $region30: #{tpu_custom_call.1} parent=15 // pred_check_branch
          %258 = sbr.rel (%p256) target = $region32
        $region31: #{tpu_custom_call.1} parent=15 // pred_region
          %s259 = sand.u32 %s130, 1
          %s260 = scalar_lea.sflag [#allocation9], %s259
          %s261 = sand.u32 %s130, 1
          %s262 = smul.addr %s261, 8
          %s263 = scalar_lea.vmem [#allocation8], %s262
          %s264 = smul.u32 2, %s30
          %s266 = ssub.s32 128, 128
          %267 = vsyncadd %s260, %s266
          %s268 = smul.addr %s29, 2
          %s269 = sadd.s32 %s264, %s268
          %s270 = smul.addr %s269, 64
          %s271 = scalar_lea.hbm %s3, %s270
          %s273 = sshll.u32 %s263, 4
          %s274 = int_to_ptr.vmem [resolvable:$true] %s273
          %276 = dma.hbm_to_vmem [thread:$0]  %s271, 128, %s274, %s260
        $region32: #{tpu_custom_call.1} parent=15 // pred_fallthru
          _
      $region16: #{tpu_custom_call.1} parent=5 // pred_fallthru
        _
      %p277 = scmp.le.s32.totalorder 1, %s22
      %p278 = scmp.lt.s32.totalorder %s22, 3
      %p279 = pnand %p277, %p278
      %p280 = pneg %p279
      // Predicated region
      $region33: #{tpu_custom_call.1} parent=5 // pred_check
        _
      $region34: #{tpu_custom_call.1} parent=5 // pred_check_branch
        %282 = sbr.rel (%p279) target = $region36
      $region35: #{tpu_custom_call.1} parent=5 // pred_region
        %s283 = ssub.s32 %s22, 1
        %s284 = sand.u32 %s49, 1
        %s285 = scalar_lea.sflag [#allocation3], %s284
        %s286 = sand.u32 %s49, 1
        %s287 = smul.addr %s286, 8
        %s288 = scalar_lea.vmem [#allocation2], %s287
        // Predicated region
        $region37: #{tpu_custom_call.1} parent=35 // pred_check
          %p289 = pneg %p62
        $region38: #{tpu_custom_call.1} parent=35 // pred_check_branch
          %291 = sbr.rel (%p289) target = $region40
        $region39: #{tpu_custom_call.1} parent=35 // pred_region
          %292 = dma.done %s285, 128
        $region40: #{tpu_custom_call.1} parent=35 // pred_fallthru
          _
        %s293 = sand.u32 %s27, 1
        %s294 = scalar_lea.sflag [#allocation6], %s293
        %s295 = sand.u32 %s77, 1
        %s296 = smul.addr %s295, 8
        %s297 = scalar_lea.vmem [#allocation5], %s296
        // Predicated region
        $region41: #{tpu_custom_call.1} parent=35 // pred_check
          %p298 = pneg %p90
        $region42: #{tpu_custom_call.1} parent=35 // pred_check_branch
          %300 = sbr.rel (%p298) target = $region44
        $region43: #{tpu_custom_call.1} parent=35 // pred_region
          %301 = dma.done %s294, 128
        $region44: #{tpu_custom_call.1} parent=35 // pred_fallthru
          _
        %s302 = sand.u32 %s27, 1
        %s303 = scalar_lea.sflag [#allocation6], %s302
        %s304 = sand.u32 %s105, 1
        %s305 = smul.addr %s304, 8
        %s306 = scalar_lea.vmem [#allocation7], %s305
        // Predicated region
        $region45: #{tpu_custom_call.1} parent=35 // pred_check
          %p307 = pneg %p118
        $region46: #{tpu_custom_call.1} parent=35 // pred_check_branch
          %309 = sbr.rel (%p307) target = $region48
        $region47: #{tpu_custom_call.1} parent=35 // pred_region
          %310 = dma.done %s303, 128
        $region48: #{tpu_custom_call.1} parent=35 // pred_fallthru
          _
        %s311 = sand.u32 %s133, 1
        %s312 = scalar_lea.sflag [#allocation9], %s311
        %s313 = sand.u32 %s133, 1
        %s314 = smul.addr %s313, 8
        %s315 = scalar_lea.vmem [#allocation8], %s314
        // Predicated region
        $region49: #{tpu_custom_call.1} parent=35 // pred_check
          %p316 = pneg %p146
        $region50: #{tpu_custom_call.1} parent=35 // pred_check_branch
          %318 = sbr.rel (%p316) target = $region52
        $region51: #{tpu_custom_call.1} parent=35 // pred_region
          %319 = dma.done %s312, 128
        $region52: #{tpu_custom_call.1} parent=35 // pred_fallthru
          _
        %s320 = sand.u32 %s49, 1
        %s321 = scalar_lea.sflag [#allocation3], %s320
        %s322 = sand.u32 %s49, 1
        %s323 = smul.addr %s322, 8
        %s324 = scalar_lea.vmem [#allocation2], %s323
        %p325 = pneg %p62
        %p326 = pneg %p59
        %s327 = sand.u32 %s27, 1
        %s328 = scalar_lea.sflag [#allocation6], %s327
        %s329 = sand.u32 %s77, 1
        %s330 = smul.addr %s329, 8
        %s331 = scalar_lea.vmem [#allocation5], %s330
        %p332 = pneg %p90
        %p333 = pneg %p87
        %s334 = sand.u32 %s27, 1
        %s335 = scalar_lea.sflag [#allocation6], %s334
        %s336 = sand.u32 %s105, 1
        %s337 = smul.addr %s336, 8
        %s338 = scalar_lea.vmem [#allocation7], %s337
        %p339 = pneg %p118
        %p340 = pneg %p115
        %s341 = sand.u32 %s133, 1
        %s342 = scalar_lea.sflag [#allocation9], %s341
        %s343 = sand.u32 %s133, 1
        %s344 = smul.addr %s343, 8
        %s345 = scalar_lea.vmem [#allocation8], %s344
        %p346 = pneg %p146
        %p347 = pneg %p143
        %p348 = pneg %p174
        %p349 = pneg %p171
        %s350 = sand.u32 %s161, 1
        %s351 = scalar_lea.sflag [#allocation4], %s350
        %s352 = sand.u32 %s161, 1
        %s353 = smul.addr %s352, 2
        %s354 = scalar_lea.vmem [#allocation10], %s353
        %s355 = smul.u32 2, %s32
        %s356 = smul.u32 2, %s32
        %s357 = smul.u32 2, %s32
        %s358 = smul.u32 2, %s32
        %s359 = sadd.s32 %s31, %s32
        %v360 = vld [vmem:[%s288] sm:$0xff]
        %v361 = vmul.f32 %v360, %v360
        %v363 = vcombine.high %v361, %v361
        %vm365 = vcmask 1043456
        %v366 = vsel %vm365, %v361, 0.0
        %v367 = vrot.slane %v366, 4
        %v368 = vadd.f32 %v366, %v367
        %v369 = vrot.slane %v368, 2
        %v370 = vadd.f32 %v368, %v369
        %v371 = vrot.slane %v370, 1
        %v372 = vadd.f32 %v370, %v371
        %v373 = vsel %vm365, %v363, 0.0
        %v374 = vrot.slane %v373, 4
        %v375 = vadd.f32 %v373, %v374
        %v376 = vrot.slane %v375, 2
        %v377 = vadd.f32 %v375, %v376
        %v378 = vrot.slane %v377, 1
        %v379 = vadd.f32 %v377, %v378
        %v380 = vrsqrt.pop %v372
        %v381 = vmul.f32 %v372, %v380
        %vm382 = vcmp.eq.f32.partialorder %v372, inf
        %v383 = vsel %vm382, %v372, %v381
        %vm384 = vcmp.eq.f32.partialorder %v372, 0.0
        %v385 = vand.u32 %v372, 2147483648
        %v386 = vsel %vm384, %v385, %v383
        %v387 = vrsqrt.pop %v379
        %v388 = vmul.f32 %v379, %v387
        %vm389 = vcmp.eq.f32.partialorder %v379, inf
        %v390 = vsel %vm389, %v379, %v388
        %vm391 = vcmp.eq.f32.partialorder %v379, 0.0
        %v392 = vand.u32 %v379, 2147483648
        %v393 = vsel %vm391, %v392, %v390
        %v394 = vmax.f32 %v386, 1e-12
        %v395 = vmax.f32 %v393, 1e-12
        %v396 = vrcp.pop %v394
        %v397 = vmul.f32 1.0, %v396
        %v398 = vrcp.pop %v395
        %v399 = vmul.f32 1.0, %v398
        %v402 = vcombine.low %v397, %v399
        %v404 = vmul.f32 %v360, %v402
        %v405 = vld [vmem:[%s297] sm:$0xff]
        %v406 = vmul.f32 %v405, %v405
        %v408 = vcombine.high %v406, %v406
        %v410 = vsel %vm365, %v406, 0.0
        %v411 = vrot.slane %v410, 4
        %v412 = vadd.f32 %v410, %v411
        %v413 = vrot.slane %v412, 2
        %v414 = vadd.f32 %v412, %v413
        %v415 = vrot.slane %v414, 1
        %v416 = vadd.f32 %v414, %v415
        %v417 = vsel %vm365, %v408, 0.0
        %v418 = vrot.slane %v417, 4
        %v419 = vadd.f32 %v417, %v418
        %v420 = vrot.slane %v419, 2
        %v421 = vadd.f32 %v419, %v420
        %v422 = vrot.slane %v421, 1
        %v423 = vadd.f32 %v421, %v422
        %v424 = vrsqrt.pop %v416
        %v425 = vmul.f32 %v416, %v424
        %vm426 = vcmp.eq.f32.partialorder %v416, inf
        %v427 = vsel %vm426, %v416, %v425
        %vm428 = vcmp.eq.f32.partialorder %v416, 0.0
        %v429 = vand.u32 %v416, 2147483648
        %v430 = vsel %vm428, %v429, %v427
        %v431 = vrsqrt.pop %v423
        %v432 = vmul.f32 %v423, %v431
        %vm433 = vcmp.eq.f32.partialorder %v423, inf
        %v434 = vsel %vm433, %v423, %v432
        %vm435 = vcmp.eq.f32.partialorder %v423, 0.0
        %v436 = vand.u32 %v423, 2147483648
        %v437 = vsel %vm435, %v436, %v434
        %v438 = vmax.f32 %v430, 1e-12
        %v439 = vmax.f32 %v437, 1e-12
        %v440 = vrcp.pop %v438
        %v441 = vmul.f32 1.0, %v440
        %v442 = vrcp.pop %v439
        %v443 = vmul.f32 1.0, %v442
        %v446 = vcombine.low %v441, %v443
        %v448 = vmul.f32 %v405, %v446
        %v449 = vsub.f32 %v448, %v404
        %v450 = vand.u32 2147483647, %v449
        %v452 = vcombine.high %v450, %v450
        %v454 = vsel %vm365, %v450, 0.0
        %v455 = vrot.slane %v454, 4
        %v456 = vadd.f32 %v454, %v455
        %v457 = vrot.slane %v456, 2
        %v458 = vadd.f32 %v456, %v457
        %v459 = vrot.slane %v458, 1
        %v460 = vadd.f32 %v458, %v459
        %v461 = vsel %vm365, %v452, 0.0
        %v462 = vrot.slane %v461, 4
        %v463 = vadd.f32 %v461, %v462
        %v464 = vrot.slane %v463, 2
        %v465 = vadd.f32 %v463, %v464
        %v466 = vrot.slane %v465, 1
        %v467 = vadd.f32 %v465, %v466
        %v468 = vadd.f32 %v460, 0.0
        %v469 = vadd.f32 %v467, 0.0
        %v470 = vld [vmem:[%s306] sm:$0xff]
        %v471 = vmul.f32 %v470, %v470
        %v473 = vcombine.high %v471, %v471
        %v475 = vsel %vm365, %v471, 0.0
        %v476 = vrot.slane %v475, 4
        %v477 = vadd.f32 %v475, %v476
        %v478 = vrot.slane %v477, 2
        %v479 = vadd.f32 %v477, %v478
        %v480 = vrot.slane %v479, 1
        %v481 = vadd.f32 %v479, %v480
        %v482 = vsel %vm365, %v473, 0.0
        %v483 = vrot.slane %v482, 4
        %v484 = vadd.f32 %v482, %v483
        %v485 = vrot.slane %v484, 2
        %v486 = vadd.f32 %v484, %v485
        %v487 = vrot.slane %v486, 1
        %v488 = vadd.f32 %v486, %v487
        %v489 = vrsqrt.pop %v481
        %v490 = vmul.f32 %v481, %v489
        %vm491 = vcmp.eq.f32.partialorder %v481, inf
        %v492 = vsel %vm491, %v481, %v490
        %vm493 = vcmp.eq.f32.partialorder %v481, 0.0
        %v494 = vand.u32 %v481, 2147483648
        %v495 = vsel %vm493, %v494, %v492
        %v496 = vrsqrt.pop %v488
        %v497 = vmul.f32 %v488, %v496
        %vm498 = vcmp.eq.f32.partialorder %v488, inf
        %v499 = vsel %vm498, %v488, %v497
        %vm500 = vcmp.eq.f32.partialorder %v488, 0.0
        %v501 = vand.u32 %v488, 2147483648
        %v502 = vsel %vm500, %v501, %v499
        %v503 = vmax.f32 %v495, 1e-12
        %v504 = vmax.f32 %v502, 1e-12
        %v505 = vrcp.pop %v503
        %v506 = vmul.f32 1.0, %v505
        %v507 = vrcp.pop %v504
        %v508 = vmul.f32 1.0, %v507
        %v511 = vcombine.low %v506, %v508
        %v513 = vmul.f32 %v470, %v511
        %v514 = vsub.f32 %v513, %v448
        %v515 = vand.u32 2147483647, %v514
        %v517 = vcombine.high %v515, %v515
        %v519 = vsel %vm365, %v515, 0.0
        %v520 = vrot.slane %v519, 4
        %v521 = vadd.f32 %v519, %v520
        %v522 = vrot.slane %v521, 2
        %v523 = vadd.f32 %v521, %v522
        %v524 = vrot.slane %v523, 1
        %v525 = vadd.f32 %v523, %v524
        %v526 = vsel %vm365, %v517, 0.0
        %v527 = vrot.slane %v526, 4
        %v528 = vadd.f32 %v526, %v527
        %v529 = vrot.slane %v528, 2
        %v530 = vadd.f32 %v528, %v529
        %v531 = vrot.slane %v530, 1
        %v532 = vadd.f32 %v530, %v531
        %v533 = vadd.f32 %v468, %v525
        %v534 = vadd.f32 %v469, %v532
        %v535 = vld [vmem:[%s315] sm:$0xff]
        %v536 = vmul.f32 %v535, %v535
        %v538 = vcombine.high %v536, %v536
        %v540 = vsel %vm365, %v536, 0.0
        %v541 = vrot.slane %v540, 4
        %v542 = vadd.f32 %v540, %v541
        %v543 = vrot.slane %v542, 2
        %v544 = vadd.f32 %v542, %v543
        %v545 = vrot.slane %v544, 1
        %v546 = vadd.f32 %v544, %v545
        %v547 = vsel %vm365, %v538, 0.0
        %v548 = vrot.slane %v547, 4
        %v549 = vadd.f32 %v547, %v548
        %v550 = vrot.slane %v549, 2
        %v551 = vadd.f32 %v549, %v550
        %v552 = vrot.slane %v551, 1
        %v553 = vadd.f32 %v551, %v552
        %v554 = vrsqrt.pop %v546
        %v555 = vmul.f32 %v546, %v554
        %vm556 = vcmp.eq.f32.partialorder %v546, inf
        %v557 = vsel %vm556, %v546, %v555
        %vm558 = vcmp.eq.f32.partialorder %v546, 0.0
        %v559 = vand.u32 %v546, 2147483648
        %v560 = vsel %vm558, %v559, %v557
        %v561 = vrsqrt.pop %v553
        %v562 = vmul.f32 %v553, %v561
        %vm563 = vcmp.eq.f32.partialorder %v553, inf
        %v564 = vsel %vm563, %v553, %v562
        %vm565 = vcmp.eq.f32.partialorder %v553, 0.0
        %v566 = vand.u32 %v553, 2147483648
        %v567 = vsel %vm565, %v566, %v564
        %v568 = vmax.f32 %v560, 1e-12
        %v569 = vmax.f32 %v567, 1e-12
        %v570 = vrcp.pop %v568
        %v571 = vmul.f32 1.0, %v570
        %v572 = vrcp.pop %v569
        %v573 = vmul.f32 1.0, %v572
        %v576 = vcombine.low %v571, %v573
        %v578 = vmul.f32 %v535, %v576
        %v579 = vsub.f32 %v578, %v513
        %v580 = vand.u32 2147483647, %v579
        %v582 = vcombine.high %v580, %v580
        %v584 = vsel %vm365, %v580, 0.0
        %v585 = vrot.slane %v584, 4
        %v586 = vadd.f32 %v584, %v585
        %v587 = vrot.slane %v586, 2
        %v588 = vadd.f32 %v586, %v587
        %v589 = vrot.slane %v588, 1
        %v590 = vadd.f32 %v588, %v589
        %v591 = vsel %vm365, %v582, 0.0
        %v592 = vrot.slane %v591, 4
        %v593 = vadd.f32 %v591, %v592
        %v594 = vrot.slane %v593, 2
        %v595 = vadd.f32 %v593, %v594
        %v596 = vrot.slane %v595, 1
        %v597 = vadd.f32 %v595, %v596
        %v598 = vadd.f32 %v533, %v590
        %v599 = vadd.f32 %v534, %v597
        %v602 = vcombine.low %v598, %v599
        %v604 = vunpack.c.l.s4 1966171168
        %v605 = vunpack.c.0.s8 %v604
        %v606 = vlaneseq
        %v607 = vshrl.u32 %v606, 7
        %v608 = vsub.s32 %v605, %v607
        %v609 = vrot.slane %v602, %v608
        %v611 = vunpack.c.l.s4 1966171168
        %v612 = vunpack.c.0.s8 %v611
        %v613 = vlaneseq
        %v614 = vshrl.u32 %v613, 7
        %v615 = vsub.s32 %v612, %v614
        %v616 = vrot.slane %v609, %v615
        %v618 = vlaneseq
        %vm619 = vcmp.ge.s32.totalorder %v618, 0
        %vm620 = vcmp.lt.s32.totalorder %v618, 256
        %vm621 = vmand %vm619, %vm620
        %622 = vst.msk [vmem:[%s354] sm:$0x3] %vm621, %v616
        %s623 = sand.u32 %s161, 1
        %s624 = scalar_lea.sflag [#allocation4], %s623
        %s625 = sand.u32 %s161, 1
        %s626 = smul.addr %s625, 2
        %s627 = scalar_lea.vmem [#allocation10], %s626
        // Predicated region
        $region53: #{tpu_custom_call.1} parent=35 // pred_check
          %p628 = pneg %p171
        $region54: #{tpu_custom_call.1} parent=35 // pred_check_branch
          %630 = sbr.rel (%p628) target = $region56
        $region55: #{tpu_custom_call.1} parent=35 // pred_region
          %s631 = sadd.s32 %s31, %s32
          %s633 = ssub.s32 32, 32
          %634 = vsyncadd %s624, %s633
          %s635 = smul.addr %s631, 2
          %s636 = smul.addr %s635, 16
          %s637 = scalar_lea.hbm %s4, %s636
          %s639 = sshll.u32 %s627, 4
          %s640 = int_to_ptr.vmem [resolvable:$true] %s639
          %642 = dma.vmem_to_hbm [thread:$0]  %s640, 32, %s637, %s624
        $region56: #{tpu_custom_call.1} parent=35 // pred_fallthru
          _
      $region36: #{tpu_custom_call.1} parent=5 // pred_fallthru
        _
      %p643 = scmp.le.s32.totalorder 2, %s22
      // Predicated region
      $region57: #{tpu_custom_call.1} parent=5 // pred_check
        %p644 = pneg %p643
      $region58: #{tpu_custom_call.1} parent=5 // pred_check_branch
        %646 = sbr.rel (%p644) target = $region60
      $region59: #{tpu_custom_call.1} parent=5 // pred_region
        %s647 = ssub.s32 %s22, 2
        // Predicated region
        $region61: #{tpu_custom_call.1} parent=59 // pred_check
          %p648 = pneg %p177
        $region62: #{tpu_custom_call.1} parent=59 // pred_check_branch
          %650 = sbr.rel (%p648) target = $region64
        $region63: #{tpu_custom_call.1} parent=59 // pred_region
          %s651 = sand.u32 %s162, 1
          %s652 = scalar_lea.sflag [#allocation4], %s651
          %s653 = sand.u32 %s162, 1
          %s654 = smul.addr %s653, 2
          %s655 = scalar_lea.vmem [#allocation10], %s654
          %656 = dma.done %s652, 32
        $region64: #{tpu_custom_call.1} parent=59 // pred_fallthru
          _
      $region60: #{tpu_custom_call.1} parent=5 // pred_fallthru
        _
    $region6: #{tpu_custom_call.1} parent=1 // loop_footer
      %s26 = sadd.s32 1, %s22
    $region7: #{tpu_custom_call.1} parent=1 // loop_footer_branch
      %21 = sbr.rel target = $region3
    $region8: #{tpu_custom_call.1} parent=1 // loop_exit
      _
    %657 = vsyncpa [#allocation3], 1
    %s658 = scalar_lea.sflag [#allocation3], 1
    %659 = vsyncpa %s658, 1
    %660 = vsyncpa [#allocation6], 1
    %s661 = scalar_lea.sflag [#allocation6], 1
    %662 = vsyncpa %s661, 1
    %663 = vsyncpa [#allocation9], 1
    %s664 = scalar_lea.sflag [#allocation9], 1
    %665 = vsyncpa %s664, 1
    %666 = vsyncpa [#allocation4], 1
    %s667 = scalar_lea.sflag [#allocation4], 1
    %668 = vsyncpa %s667, 1

</llo_original>
